<compile_context>
chip_gen: v7x
topology: tpu7x:2x2x1
jax: 0.10.0
libtpu: 0.0.40
codegen_flags: <defaults>
</compile_context>

<pallas_src>
import jax
import jax.numpy as jnp
from jax import lax
from jax.experimental import pallas as pl
from jax.experimental.pallas import tpu as pltpu


LN_EPS = 1e-5  # PyTorch nn.LayerNorm default


# --------------------------------------------------------------------------- #
# Kernel
# --------------------------------------------------------------------------- #
def value_network_kernel(
    x_ref,      # (TB, S)  f32   state tile
    w1_ref,     # (S, H)   f32   fc1 weight, pre-transposed (in, out)
    w2_ref,     # (H, H)   f32   fc2 weight with LN1 gamma folded in (W2')
    vec_ref,    # (8, H)   f32   rows: b1, c(=colsums W2'), b2', g2*w3, pad...
    scal_ref,   # (2,)     f32   SMEM: [sum(g2*w3), sum(be2*w3)+b3]
    o_ref,      # (TB, 1)  f32
):
    H = w1_ref.shape[1]
    inv_h = 1.0 / H

    b1 = vec_ref[0:1, :]
    c = vec_ref[1:2, :]
    b2p = vec_ref[2:3, :]
    gw = vec_ref[3:4, :]
    sgw = scal_ref[0]
    sbw = scal_ref[1]

    # fc1 + ReLU (f32 MXU matmul, f32 accumulate). dropout1 = identity (eval).
    x = x_ref[...]
    h1 = jnp.dot(x, w1_ref[...], preferred_element_type=jnp.float32) + b1
    h1 = jnp.maximum(h1, 0.0)

    # LN1 statistics only (affine folded into W2'/c/b2').
    # Two-moment variance: the two reductions are independent.
    mu1 = jnp.sum(h1, axis=-1, keepdims=True) * inv_h
    m2_1 = jnp.sum(h1 * h1, axis=-1, keepdims=True) * inv_h
    var1 = jnp.maximum(m2_1 - mu1 * mu1, 0.0)
    r1 = lax.rsqrt(var1 + LN_EPS)

    # fc2 with LN1 folded: LN1(h1) @ W2 + b2 == r1*(h1 @ W2' - mu1*c) + b2'.
    p = jnp.dot(h1, w2_ref[...], preferred_element_type=jnp.float32)
    h2 = jnp.maximum(r1 * (p - mu1 * c) + b2p, 0.0)

    # LN2 + fc3 folded into per-row stats (dropout2 = identity):
    #   v = r2*(sum(h2*(g2*w3)) - mu2*sum(g2*w3)) + sum(be2*w3) + b3
    mu2 = jnp.sum(h2, axis=-1, keepdims=True) * inv_h
    m2_2 = jnp.sum(h2 * h2, axis=-1, keepdims=True) * inv_h
    var2 = jnp.maximum(m2_2 - mu2 * mu2, 0.0)
    r2 = lax.rsqrt(var2 + LN_EPS)
    t = jnp.sum(h2 * gw, axis=-1, keepdims=True)

    v = r2 * (t - mu2 * sgw) + sbw
    o_ref[...] = v.astype(o_ref.dtype)


# --------------------------------------------------------------------------- #
# Grid / tiling policy
# --------------------------------------------------------------------------- #
def _num_tensorcores():
    # v5e/v6e have 1 TensorCore per chip; v7x has 2. Best-effort string check.
    try:
        kind = jax.devices()[0].device_kind.lower()
    except Exception:
        return 1
    return 2 if "v7" in kind else 1


def _default_block_b(B, num_cores=1):
    # Cap at 256 (a 512-row f32 (TB,128) intermediate is already the whole
    # vreg file -> spill-bound).  Single-TC chips (v5e/v6e): fewest grid steps
    # (each extra step is ~0.35 us of pure overhead).  Multi-TC (v7x): prefer
    # an even number of grid steps so "parallel" can shard across both cores.
    cands = [c for c in (256, 128, 64, 32, 16, 8) if c <= B and B % c == 0]
    if not cands:
        return B  # odd / tiny batch: one full-batch tile
    if num_cores >= 2:
        for c in cands:
            if (B // c) % num_cores == 0:
                return c
    return cands[0]


# --------------------------------------------------------------------------- #
# Wrapper
# --------------------------------------------------------------------------- #
def value_network_forward(state, kparams, *, block_b=None):
    """state: [B, state_size] float32 -> value: [B, 1] float32."""
    B, S = state.shape
    H = kparams["w1t"].shape[1]
    if block_b is None:
        block_b = _default_block_b(B, _num_tensorcores())
    assert B % block_b == 0
    assert block_b % 8 == 0 or block_b == B

    def full(shape):
        return pl.BlockSpec(shape, lambda i, _n=len(shape): (0,) * _n)

    grid_spec = pltpu.PrefetchScalarGridSpec(
        num_scalar_prefetch=0,
        grid=(B // block_b,),
        in_specs=[
            pl.BlockSpec((block_b, S), lambda i: (i, 0)),        # state tile
            full((S, H)),                                        # w1 (f32)
            full((H, H)),                                        # W2' (f32)
            full((8, H)),                                        # packed vectors
            pl.BlockSpec(memory_space=pltpu.MemorySpace.SMEM),   # fold scalars
        ],
        out_specs=pl.BlockSpec((block_b, 1), lambda i: (i, 0)),
    )

    return pl.pallas_call(
        value_network_kernel,
        out_shape=jax.ShapeDtypeStruct((B, 1), jnp.float32),
        grid_spec=grid_spec,
        compiler_params=pltpu.CompilerParams(
            dimension_semantics=("parallel",)),
    )(state, kparams["w1t"], kparams["w2p"], kparams["vec"], kparams["scal"])


# --------------------------------------------------------------------------- #
# Parameters (PyTorch-faithful raw params + one-time algebraic folding)
# --------------------------------------------------------------------------- #
def make_raw_params(key, state_size, hidden_size=128):
    """Mirrors ValueNetwork._initialize_weights (orthogonal gain=sqrt(2),
    zero biases, LayerNorm gamma=1 / beta=0)."""
    k1, k2, k3 = jax.random.split(key, 3)
    gain = 2.0 ** 0.5

    def ortho(k, out_f, in_f):
        return jax.nn.initializers.orthogonal(scale=gain)(
            k, (out_f, in_f), jnp.float32)

    H = hidden_size
    return {
        "w1": ortho(k1, H, state_size),          # (H, S)  PyTorch (out, in)
        "b1": jnp.zeros((H,), jnp.float32),
        "g1": jnp.ones((H,), jnp.float32),
        "be1": jnp.zeros((H,), jnp.float32),
        "w2": ortho(k2, H, H),                   # (H, H)
        "b2": jnp.zeros((H,), jnp.float32),
        "g2": jnp.ones((H,), jnp.float32),
        "be2": jnp.zeros((H,), jnp.float32),
        "w3": ortho(k3, 1, H),                   # (1, H)
        "b3": jnp.zeros((1,), jnp.float32),
    }


def fold_params(raw):
    """One-time wrapper-side folding of LN1 affine into fc2 and LN2+fc3 into
    per-row constants (valid because dropout is identity in eval mode)."""
    H = raw["w1"].shape[0]
    w1t = raw["w1"].T                                   # (S, H)
    w2t = raw["w2"].T                                   # (H_in, H_out)

    # LN1 affine -> fc2
    w2p = raw["g1"][:, None] * w2t                      # W2' = diag(g1) @ W2t
    c = jnp.sum(w2p, axis=0)                            # (H,)  == g1 @ W2t
    b2p = raw["b2"] + raw["be1"] @ w2t                  # (H,)

    # LN2 + fc3 -> per-row constants
    w3 = raw["w3"][0]                                   # (H,)
    gw = raw["g2"] * w3                                 # (H,)
    sgw = jnp.sum(gw)
    sbw = jnp.sum(raw["be2"] * w3) + raw["b3"][0]

    pad = jnp.zeros((4, H), jnp.float32)
    vec = jnp.concatenate(
        [jnp.stack([raw["b1"], c, b2p, gw], axis=0), pad], axis=0)  # (8, H)
    scal = jnp.stack([sgw, sbw]).astype(jnp.float32)                 # (2,)

    return {"w1t": w1t, "w2p": w2p, "vec": vec, "scal": scal}


# --------------------------------------------------------------------------- #
# Pure-JAX reference: exact (unfolded) module forward in f32, eval mode.
# --------------------------------------------------------------------------- #
def reference_forward(state, raw):
    hp = lax.Precision.HIGHEST

    def ln(h, g, b):
        mu = jnp.mean(h, axis=-1, keepdims=True)
        var = jnp.mean((h - mu) ** 2, axis=-1, keepdims=True)
        return (h - mu) * lax.rsqrt(var + LN_EPS) * g + b

    h = jnp.maximum(jnp.dot(state, raw["w1"].T, precision=hp) + raw["b1"], 0.0)
    h = ln(h, raw["g1"], raw["be1"])          # dropout1: identity (eval)
    h = jnp.maximum(jnp.dot(h, raw["w2"].T, precision=hp) + raw["b2"], 0.0)
    h = ln(h, raw["g2"], raw["be2"])          # dropout2: identity (eval)
    return jnp.dot(h, raw["w3"].T, precision=hp) + raw["b3"]


if __name__ == "__main__":
    key = jax.random.PRNGKey(0)
    k_param, k_state = jax.random.split(key)

    batch = 8
    state_size = 16
    hidden_size = 128  # module default

    raw = make_raw_params(k_param, state_size, hidden_size)
    kparams = fold_params(raw)
    state = jax.random.normal(k_state, (batch, state_size), jnp.float32)

    value = jax.block_until_ready(value_network_forward(state, kparams))
    ref = reference_forward(state, raw)

    assert value.shape == (batch, 1)
    # Tolerance leaves headroom for the on-device matmul precision while still
    # catching any error in the LN1/LN2 algebraic folding.
    assert jnp.allclose(value, ref, atol=2e-2, rtol=2e-2), (value, ref)

    # TODO(synk): training-mode Dropout(0.3) would need pltpu.prng_seed /
    # prng_random_bits; eval-mode (identity) semantics are implemented here.
    print("KERNEL_OK")
</pallas_src>

<mosaic_0001>
module attributes {stable_mosaic.version = 11 : i64} {
  func.func @value_network_kernel(%arg0: i32, %arg1: memref<8x16xf32, #tpu.memory_space<vmem>>, %arg2: memref<16x128xf32, #tpu.memory_space<vmem>>, %arg3: memref<128x128xf32, #tpu.memory_space<vmem>>, %arg4: memref<8x128xf32, #tpu.memory_space<vmem>>, %arg5: memref<2xf32, #tpu.memory_space<smem>>, %arg6: memref<8x1xf32, #tpu.memory_space<vmem>>) attributes {dimension_semantics = [#tpu.dimension_semantics<parallel>], iteration_bounds = array<i64: 1>, scalar_prefetch = 0 : i64, scratch_operands = 0 : i64, tpu.core_type = #tpu.core_type<tc>, window_params = [{transform_indices = @transform_0, window_bounds = array<i64: 8, 16>}, {pipeline_mode = #tpu.pipeline_mode<synchronous>, transform_indices = @transform_1, window_bounds = array<i64: 16, 128>}, {pipeline_mode = #tpu.pipeline_mode<synchronous>, transform_indices = @transform_2, window_bounds = array<i64: 128, 128>}, {pipeline_mode = #tpu.pipeline_mode<synchronous>, transform_indices = @transform_3, window_bounds = array<i64: 8, 128>}, {transform_indices = @transform_4, window_bounds = array<i64: 2>}, {transform_indices = @transform_5, window_bounds = array<i64: 8, 1>}]} {
    %c0 = arith.constant 0 : index
    %c0_0 = arith.constant 0 : index
    %0 = vector.load %arg4[%c0, %c0_0] : memref<8x128xf32, #tpu.memory_space<vmem>>, vector<1x128xf32>
    %c1 = arith.constant 1 : index
    %c0_1 = arith.constant 0 : index
    %1 = vector.load %arg4[%c1, %c0_1] : memref<8x128xf32, #tpu.memory_space<vmem>>, vector<1x128xf32>
    %c2 = arith.constant 2 : index
    %c0_2 = arith.constant 0 : index
    %2 = vector.load %arg4[%c2, %c0_2] : memref<8x128xf32, #tpu.memory_space<vmem>>, vector<1x128xf32>
    %c3 = arith.constant 3 : index
    %c0_3 = arith.constant 0 : index
    %3 = vector.load %arg4[%c3, %c0_3] : memref<8x128xf32, #tpu.memory_space<vmem>>, vector<1x128xf32>
    %c0_4 = arith.constant 0 : index
    %4 = memref.load %arg5[%c0_4] : memref<2xf32, #tpu.memory_space<smem>>
    %c1_5 = arith.constant 1 : index
    %5 = memref.load %arg5[%c1_5] : memref<2xf32, #tpu.memory_space<smem>>
    %c0_6 = arith.constant 0 : index
    %c0_7 = arith.constant 0 : index
    %6 = vector.load %arg1[%c0_6, %c0_7] : memref<8x16xf32, #tpu.memory_space<vmem>>, vector<8x16xf32>
    %c0_8 = arith.constant 0 : index
    %c0_9 = arith.constant 0 : index
    %7 = vector.load %arg2[%c0_8, %c0_9] : memref<16x128xf32, #tpu.memory_space<vmem>>, vector<16x128xf32>
    %cst = arith.constant dense<0.000000e+00> : vector<8x128xf32>
    %8 = tpu.matmul %6, %7, %cst {dimension_numbers = #tpu.dot_dimension_numbers<[1], [0], [0], [1], [0, 0, 1, 1], [], []>} : vector<8x16xf32>, vector<16x128xf32>, vector<8x128xf32> -> vector<8x128xf32>
    %9 = vector.broadcast %0 : vector<1x128xf32> to vector<8x128xf32>
    %10 = arith.addf %8, %9 : vector<8x128xf32>
    %cst_10 = arith.constant 0.000000e+00 : f32
    %11 = vector.broadcast %cst_10 : f32 to vector<8x128xf32>
    %12 = arith.maximumf %10, %11 : vector<8x128xf32>
    %cst_11 = arith.constant dense<0.000000e+00> : vector<8xf32>
    %13 = vector.multi_reduction <add>, %12, %cst_11 [1] : vector<8x128xf32> to vector<8xf32>
    %14 = vector.shape_cast %13 : vector<8xf32> to vector<8x1xf32>
    %cst_12 = arith.constant 7.812500e-03 : f32
    %15 = vector.broadcast %cst_12 : f32 to vector<8x1xf32>
    %16 = arith.mulf %14, %15 : vector<8x1xf32>
    %17 = arith.mulf %12, %12 : vector<8x128xf32>
    %cst_13 = arith.constant dense<0.000000e+00> : vector<8xf32>
    %18 = vector.multi_reduction <add>, %17, %cst_13 [1] : vector<8x128xf32> to vector<8xf32>
    %19 = vector.shape_cast %18 : vector<8xf32> to vector<8x1xf32>
    %cst_14 = arith.constant 7.812500e-03 : f32
    %20 = vector.broadcast %cst_14 : f32 to vector<8x1xf32>
    %21 = arith.mulf %19, %20 : vector<8x1xf32>
    %22 = arith.mulf %16, %16 : vector<8x1xf32>
    %23 = arith.subf %21, %22 : vector<8x1xf32>
    %cst_15 = arith.constant 0.000000e+00 : f32
    %24 = vector.broadcast %cst_15 : f32 to vector<8x1xf32>
    %25 = arith.maximumf %23, %24 : vector<8x1xf32>
    %cst_16 = arith.constant 9.99999974E-6 : f32
    %26 = vector.broadcast %cst_16 : f32 to vector<8x1xf32>
    %27 = arith.addf %25, %26 : vector<8x1xf32>
    %28 = math.rsqrt %27 : vector<8x1xf32>
    %c0_17 = arith.constant 0 : index
    %c0_18 = arith.constant 0 : index
    %29 = vector.load %arg3[%c0_17, %c0_18] : memref<128x128xf32, #tpu.memory_space<vmem>>, vector<128x128xf32>
    %cst_19 = arith.constant dense<0.000000e+00> : vector<8x128xf32>
    %30 = tpu.matmul %12, %29, %cst_19 {dimension_numbers = #tpu.dot_dimension_numbers<[1], [0], [0], [1], [0, 0, 1, 1], [], []>} : vector<8x128xf32>, vector<128x128xf32>, vector<8x128xf32> -> vector<8x128xf32>
    %31 = vector.broadcast %16 : vector<8x1xf32> to vector<8x128xf32>
    %32 = vector.broadcast %1 : vector<1x128xf32> to vector<8x128xf32>
    %33 = arith.mulf %31, %32 : vector<8x128xf32>
    %34 = arith.subf %30, %33 : vector<8x128xf32>
    %35 = vector.broadcast %28 : vector<8x1xf32> to vector<8x128xf32>
    %36 = arith.mulf %35, %34 : vector<8x128xf32>
    %37 = vector.broadcast %2 : vector<1x128xf32> to vector<8x128xf32>
    %38 = arith.addf %36, %37 : vector<8x128xf32>
    %cst_20 = arith.constant 0.000000e+00 : f32
    %39 = vector.broadcast %cst_20 : f32 to vector<8x128xf32>
    %40 = arith.maximumf %38, %39 : vector<8x128xf32>
    %cst_21 = arith.constant dense<0.000000e+00> : vector<8xf32>
    %41 = vector.multi_reduction <add>, %40, %cst_21 [1] : vector<8x128xf32> to vector<8xf32>
    %42 = vector.shape_cast %41 : vector<8xf32> to vector<8x1xf32>
    %cst_22 = arith.constant 7.812500e-03 : f32
    %43 = vector.broadcast %cst_22 : f32 to vector<8x1xf32>
    %44 = arith.mulf %42, %43 : vector<8x1xf32>
    %45 = arith.mulf %40, %40 : vector<8x128xf32>
    %cst_23 = arith.constant dense<0.000000e+00> : vector<8xf32>
    %46 = vector.multi_reduction <add>, %45, %cst_23 [1] : vector<8x128xf32> to vector<8xf32>
    %47 = vector.shape_cast %46 : vector<8xf32> to vector<8x1xf32>
    %cst_24 = arith.constant 7.812500e-03 : f32
    %48 = vector.broadcast %cst_24 : f32 to vector<8x1xf32>
    %49 = arith.mulf %47, %48 : vector<8x1xf32>
    %50 = arith.mulf %44, %44 : vector<8x1xf32>
    %51 = arith.subf %49, %50 : vector<8x1xf32>
    %cst_25 = arith.constant 0.000000e+00 : f32
    %52 = vector.broadcast %cst_25 : f32 to vector<8x1xf32>
    %53 = arith.maximumf %51, %52 : vector<8x1xf32>
    %cst_26 = arith.constant 9.99999974E-6 : f32
    %54 = vector.broadcast %cst_26 : f32 to vector<8x1xf32>
    %55 = arith.addf %53, %54 : vector<8x1xf32>
    %56 = math.rsqrt %55 : vector<8x1xf32>
    %57 = vector.broadcast %3 : vector<1x128xf32> to vector<8x128xf32>
    %58 = arith.mulf %40, %57 : vector<8x128xf32>
    %cst_27 = arith.constant dense<0.000000e+00> : vector<8xf32>
    %59 = vector.multi_reduction <add>, %58, %cst_27 [1] : vector<8x128xf32> to vector<8xf32>
    %60 = vector.shape_cast %59 : vector<8xf32> to vector<8x1xf32>
    %61 = vector.broadcast %4 : f32 to vector<8x1xf32>
    %62 = arith.mulf %44, %61 : vector<8x1xf32>
    %63 = arith.subf %60, %62 : vector<8x1xf32>
    %64 = arith.mulf %56, %63 : vector<8x1xf32>
    %65 = vector.broadcast %5 : f32 to vector<8x1xf32>
    %66 = arith.addf %64, %65 : vector<8x1xf32>
    %c0_28 = arith.constant 0 : index
    %c0_29 = arith.constant 0 : index
    %67 = vector.load %arg6[%c0_28, %c0_29] : memref<8x1xf32, #tpu.memory_space<vmem>>, vector<8x1xf32>
    tpu.vector_store %arg6[%c0_28, %c0_29], %66 {strides = array<i32>} : memref<8x1xf32, #tpu.memory_space<vmem>>, vector<8x1xf32>,
    return
  }
  func.func @transform_0(%arg0: i32) -> (i32, i32) {
    %c0_i32 = arith.constant 0 : i32
    %c0_i32_0 = arith.constant 0 : i32
    return %arg0, %c0_i32 : i32, i32
  }
  func.func @transform_1(%arg0: i32) -> (i32, i32) {
    %c0_i32 = arith.constant 0 : i32
    %c0_i32_0 = arith.constant 0 : i32
    %c0_i32_1 = arith.constant 0 : i32
    return %c0_i32, %c0_i32_0 : i32, i32
  }
  func.func @transform_2(%arg0: i32) -> (i32, i32) {
    %c0_i32 = arith.constant 0 : i32
    %c0_i32_0 = arith.constant 0 : i32
    %c0_i32_1 = arith.constant 0 : i32
    return %c0_i32, %c0_i32_0 : i32, i32
  }
  func.func @transform_3(%arg0: i32) -> (i32, i32) {
    %c0_i32 = arith.constant 0 : i32
    %c0_i32_0 = arith.constant 0 : i32
    %c0_i32_1 = arith.constant 0 : i32
    return %c0_i32, %c0_i32_0 : i32, i32
  }
  func.func @transform_4(%arg0: i32) -> i32 {
    %c0_i32 = arith.constant 0 : i32
    %c0_i32_0 = arith.constant 0 : i32
    return %c0_i32 : i32
  }
  func.func @transform_5(%arg0: i32) -> (i32, i32) {
    %c0_i32 = arith.constant 0 : i32
    %c0_i32_0 = arith.constant 0 : i32
    return %arg0, %c0_i32 : i32, i32
  }
}

</mosaic_0001>

<llo_original>
// kernel: tpu_custom_call.1
$region0: #{tpu_custom_call.1}
  #allocation0 [shape = 'u32[]', space=smem, size = 0x4, offset = 0x4, fixed_abs, tag = 'smem constant byte address 0x4 - core index']
  #allocation1 [shape = 'u32[144,128]{1,0:T(1,128)}', space=vmem, size = 0x12000, scoped, tag = 'internal scratch']
  %s0 = inlined_call_operand.hbm [shape: f32[8,16], index: 0, kind: input, shape index: {}]
  %s1 = inlined_call_operand.hbm [shape: f32[16,128], index: 1, kind: input, shape index: {}]
  %s2 = inlined_call_operand.hbm [shape: f32[128,128], index: 2, kind: input, shape index: {}]
  %s3 = inlined_call_operand.vmem [shape: f32[8,128], index: 3, kind: input, shape index: {}]
  %s4 = inlined_call_operand.vmem [shape: f32[2], index: 4, kind: input, shape index: {}]
  %s5 = inlined_call_operand.vmem [shape: f32[8,1], index: 5, kind: output, shape index: {}]
  %s6 = sld [smem:[#allocation0]]
  $region46: #{tpu_custom_call.1} parent=0
    _
  %s8 = ssub.s32 1, %s6
  %s9 = scalar_select 0, %s8, %s6
  $region1: #{tpu_custom_call.1} parent=0
    #allocation2 [shape = 'u8[4096]{0}', space=vmem, size = 0x1000, scoped, tag = 'input window, operand 0, single buffered']
    #allocation3 [shape = 's32[1]{0}', space=sflag, size = 0x4, scoped, tag = 'scoped memory for tpu_custom_call.1']
    #allocation4 [shape = 's32[1]{0}', space=sflag, size = 0x4, scoped, tag = 'scoped memory for tpu_custom_call.1']
    #allocation5 [shape = 'u8[8192]{0}', space=vmem, size = 0x2000, scoped, tag = 'input window, operand 1, single buffered']
    #allocation6 [shape = 's32[1]{0}', space=sflag, size = 0x4, scoped, tag = 'scoped memory for tpu_custom_call.1']
    #allocation7 [shape = 'u8[65536]{0}', space=vmem, size = 0x10000, scoped, tag = 'input window, operand 2, single buffered']
    #allocation8 [shape = 'u8[512]{0}', space=smem, size = 0x200, scoped, tag = 'input window, operand 4, single buffered']
    %10 = vsyncpa [#allocation3], 0
    %11 = vsyncpa [#allocation6], 0
    %12 = vsyncpa [#allocation4], 0
    // Predicated region
    $region2: #{tpu_custom_call.1} parent=1 // pred_check
      _
    $region3: #{tpu_custom_call.1} parent=1 // pred_check_branch
      %14 = sbr.rel (0) target = $region5
    $region4: #{tpu_custom_call.1} parent=1 // pred_region
      %s16 = ssub.s32 128, 128
      %17 = vsyncadd [#allocation3], %s16
      %s19 = sshll.u32 [#allocation2], 4
      %s20 = int_to_ptr.vmem [resolvable:$true] %s19
      %22 = dma.hbm_to_vmem [thread:$0]  %s0, 128, %s20, [#allocation3]
    $region5: #{tpu_custom_call.1} parent=1 // pred_fallthru
      _
    // Predicated region
    $region6: #{tpu_custom_call.1} parent=1 // pred_check
      _
    $region7: #{tpu_custom_call.1} parent=1 // pred_check_branch
      %24 = sbr.rel (0) target = $region9
    $region8: #{tpu_custom_call.1} parent=1 // pred_region
      %s26 = ssub.s32 256, 256
      %27 = vsyncadd [#allocation6], %s26
      %s28 = sshll.u32 [#allocation5], 4
      %s29 = int_to_ptr.vmem [resolvable:$true] %s28
      %34 = dma.hbm_to_vmem [thread:$0]  %s1, 256, %s29, [#allocation6], 128, 128, 8
    $region9: #{tpu_custom_call.1} parent=1 // pred_fallthru
      _
    // Predicated region
    $region10: #{tpu_custom_call.1} parent=1 // pred_check
      _
    $region11: #{tpu_custom_call.1} parent=1 // pred_check_branch
      %36 = sbr.rel (0) target = $region13
    $region12: #{tpu_custom_call.1} parent=1 // pred_region
      %s38 = ssub.s32 2048, 2048
      %39 = vsyncadd [#allocation6], %s38
      %s40 = sshll.u32 [#allocation7], 4
      %s41 = int_to_ptr.vmem [resolvable:$true] %s40
      %46 = dma.hbm_to_vmem [thread:$0]  %s2, 2048, %s41, [#allocation6], 128, 128, 8
    $region13: #{tpu_custom_call.1} parent=1 // pred_fallthru
      _
    // Predicated region
    $region14: #{tpu_custom_call.1} parent=1 // pred_check
      _
    $region15: #{tpu_custom_call.1} parent=1 // pred_check_branch
      %48 = sbr.rel (0) target = $region17
    $region16: #{tpu_custom_call.1} parent=1 // pred_region
      _
    $region17: #{tpu_custom_call.1} parent=1 // pred_fallthru
      _
    // Predicated region
    $region18: #{tpu_custom_call.1} parent=1 // pred_check
      _
    $region19: #{tpu_custom_call.1} parent=1 // pred_check_branch
      %50 = sbr.rel (0) target = $region21
    $region20: #{tpu_custom_call.1} parent=1 // pred_region
      %s52 = ssub.s32 16, 16
      %53 = vsyncadd [#allocation4], %s52
      %s55 = sshll.u32 %s4, 4
      %s56 = int_to_ptr.vmem [resolvable:$true] %s55
      %58 = dma.vmem_to_smem %s56, 16, [#allocation8], [#allocation4]
    $region21: #{tpu_custom_call.1} parent=1 // pred_fallthru
      _
    // Predicated region
    $region22: #{tpu_custom_call.1} parent=1 // pred_check
      _
    $region23: #{tpu_custom_call.1} parent=1 // pred_check_branch
      %60 = sbr.rel (0) target = $region25
    $region24: #{tpu_custom_call.1} parent=1 // pred_region
      %61 = dma.done [#allocation3], 128
    $region25: #{tpu_custom_call.1} parent=1 // pred_fallthru
      _
    // Predicated region
    $region26: #{tpu_custom_call.1} parent=1 // pred_check
      _
    $region27: #{tpu_custom_call.1} parent=1 // pred_check_branch
      %63 = sbr.rel (0) target = $region29
    $region28: #{tpu_custom_call.1} parent=1 // pred_region
      %64 = dma.done [#allocation6], 256
    $region29: #{tpu_custom_call.1} parent=1 // pred_fallthru
      _
    // Predicated region
    $region30: #{tpu_custom_call.1} parent=1 // pred_check
      _
    $region31: #{tpu_custom_call.1} parent=1 // pred_check_branch
      %66 = sbr.rel (0) target = $region33
    $region32: #{tpu_custom_call.1} parent=1 // pred_region
      %67 = dma.done [#allocation6], 2048
    $region33: #{tpu_custom_call.1} parent=1 // pred_fallthru
      _
    // Predicated region
    $region34: #{tpu_custom_call.1} parent=1 // pred_check
      _
    $region35: #{tpu_custom_call.1} parent=1 // pred_check_branch
      %69 = sbr.rel (0) target = $region37
    $region36: #{tpu_custom_call.1} parent=1 // pred_region
      %70 = dma.done [#allocation4], 16
    $region37: #{tpu_custom_call.1} parent=1 // pred_fallthru
      _
    %71 = sfence
    %v72 = vld [vmem:[%s3] sm:$0x1]
    %v73 = vld [vmem:[%s3 + $0x1] sm:$0x1]
    %v74 = vld [vmem:[%s3 + $0x2] sm:$0x1]
    %v75 = vld [vmem:[%s3 + $0x3] sm:$0x1]
    %s76 = sld [smem:[#allocation8]]
    %s77 = sld [smem:[#allocation8 + $0x1]]
    %v78 = vld [vmem:[#allocation2] sm:$0xff]
    %v79 = vld [vmem:[#allocation5] sm:$0xff]
    %v80 = vld [vmem:[#allocation5 + $0x8] sm:$0xff]
    %v81 = vlaneseq
    %v82 = vshrl.u32 %v81, 7
    %v83 = vsub.s32 0, %v82
    %v84 = vrot.slane %v72, %v83
    %vm85 = vcmask 130048
    %v87 = vsel %vm85, %v78, 0
    %89 = vmatprep.subr.mxu0 0.0
    %90 = vmatpush1.msra.mxu0 %v79
    %91 = vmatprep.subr.mxu0 0.0
    %92 = vmatpush1.msra.mxu0 %v80
    %93 = vmatprep.subr.mxu0 0.0
    %94 = vmatpush1.msra.mxu0 0.0
    %95 = vmatprep.subr.mxu0 0.0
    %96 = vmatpush1.msra.mxu0 0.0
    %97 = vmatprep.subr.mxu0 0.0
    %98 = vmatpush1.msra.mxu0 0.0
    %99 = vmatprep.subr.mxu0 0.0
    %100 = vmatpush1.msra.mxu0 0.0
    %101 = vmatprep.subr.mxu0 0.0
    %102 = vmatpush1.msra.mxu0 0.0
    %103 = vmatprep.subr.mxu0 0.0
    %104 = vmatpush1.msra.mxu0 0.0
    %105 = vmatprep.subr.mxu0 0.0
    %106 = vmatpush1.msra.mxu0 0.0
    %107 = vmatprep.subr.mxu0 0.0
    %108 = vmatpush1.msra.mxu0 0.0
    %109 = vmatprep.subr.mxu0 0.0
    %110 = vmatpush1.msra.mxu0 0.0
    %111 = vmatprep.subr.mxu0 0.0
    %112 = vmatpush1.msra.mxu0 0.0
    %113 = vmatprep.subr.mxu0 0.0
    %114 = vmatpush1.msra.mxu0 0.0
    %115 = vmatprep.subr.mxu0 0.0
    %116 = vmatpush1.msra.mxu0 0.0
    %117 = vmatprep.subr.mxu0 0.0
    %118 = vmatpush1.msra.mxu0 0.0
    %119 = vmatprep.subr.mxu0 0.0
    %120 = vmatpush1.msra.mxu0 0.0
    %121 = vmatprep.subr.mxu0 0.0
    %122 = vmatpush1.msra.mxu0 0.0
    %123 = vmatprep.subr.mxu0 0.0
    %124 = vmatpush1.msra.mxu0 0.0
    %125 = vmatprep.subr.mxu0 0.0
    %126 = vmatpush1.msra.mxu0 0.0
    %127 = vmatprep.subr.mxu0 0.0
    %128 = vmatpush1.msra.mxu0 0.0
    %129 = vmatprep.subr.mxu0 0.0
    %130 = vmatpush1.msra.mxu0 0.0
    %131 = vmatprep.subr.mxu0 0.0
    %132 = vmatpush1.msra.mxu0 0.0
    %133 = vmatprep.subr.mxu0 0.0
    %134 = vmatpush1.msra.mxu0 0.0
    %135 = vmatprep.subr.mxu0 0.0
    %136 = vmatpush1.msra.mxu0 0.0
    %137 = vmatprep.subr.mxu0 0.0
    %138 = vmatpush1.msra.mxu0 0.0
    %139 = vmatprep.subr.mxu0 0.0
    %140 = vmatpush1.msra.mxu0 0.0
    %141 = vmatprep.subr.mxu0 0.0
    %142 = vmatpush1.msra.mxu0 0.0
    %143 = vmatprep.subr.mxu0 0.0
    %144 = vmatpush1.msra.mxu0 0.0
    %145 = vmatprep.subr.mxu0 0.0
    %146 = vmatpush1.msra.mxu0 0.0
    %147 = vmatprep.subr.mxu0 0.0
    %148 = vmatpush1.msra.mxu0 0.0
    %149 = vmatprep.subr.mxu0 0.0
    %150 = vmatpush1.msra.mxu0 0.0
    %151 = vmatprep.subr.mxu0 0.0
    %152 = vmatpush1.msra.mxu0 0.0
    %153 = vmatprep.mubr.f32.mxu0 0.0
    %154 = vmatmul.mubr.f32.gmra.mrb[0].mxu0 %v87
    %v155 = vpop.f32.mrb[0].mxu0
    %v156 = vadd.f32 %v84, %v155
    %v157 = vpop.f32.mrb[0].mxu0
    %158 = vdwg.mxu0
    %v159 = vmax.f32 %v156, 0.0
    %160 = vadd.xlane.f32.xlu0 %v159
    %v161 = vpop.xlane.xlu0 %160
    %v162 = vmul.f32 %v161, 0.0078125
    %v163 = vmul.f32 %v159, %v159
    %164 = vadd.xlane.f32.xlu0 %v163
    %v165 = vpop.xlane.xlu0 %164
    %v166 = vmul.f32 %v165, 0.0078125
    %v167 = vmul.f32 %v162, %v162
    %v168 = vsub.f32 %v166, %v167
    %v169 = vmax.f32 %v168, 0.0
    %v170 = vadd.f32 %v169, 1e-05
    %v171 = vrsqrt.pop %v170
    %v172 = vld [vmem:[#allocation7] sm:$0xff]
    %v173 = vld [vmem:[#allocation7 + $0x8] sm:$0xff]
    %v174 = vld [vmem:[#allocation7 + $0x10] sm:$0xff]
    %v175 = vld [vmem:[#allocation7 + $0x18] sm:$0xff]
    %v176 = vld [vmem:[#allocation7 + $0x20] sm:$0xff]
    %v177 = vld [vmem:[#allocation7 + $0x28] sm:$0xff]
    %v178 = vld [vmem:[#allocation7 + $0x30] sm:$0xff]
    %v179 = vld [vmem:[#allocation7 + $0x38] sm:$0xff]
    %v180 = vld [vmem:[#allocation7 + $0x40] sm:$0xff]
    %v181 = vld [vmem:[#allocation7 + $0x48] sm:$0xff]
    %v182 = vld [vmem:[#allocation7 + $0x50] sm:$0xff]
    %v183 = vld [vmem:[#allocation7 + $0x58] sm:$0xff]
    %v184 = vld [vmem:[#allocation7 + $0x60] sm:$0xff]
    %v185 = vld [vmem:[#allocation7 + $0x68] sm:$0xff]
    %v186 = vld [vmem:[#allocation7 + $0x70] sm:$0xff]
    %v187 = vld [vmem:[#allocation7 + $0x78] sm:$0xff]
    %188 = vmatprep.subr.mxu0 0.0
    %189 = vmatpush1.msra.mxu0 %v172
    %190 = vmatprep.subr.mxu0 0.0
    %191 = vmatpush1.msra.mxu0 %v173
    %192 = vmatprep.subr.mxu0 0.0
    %193 = vmatpush1.msra.mxu0 %v174
    %194 = vmatprep.subr.mxu0 0.0
    %195 = vmatpush1.msra.mxu0 %v175
    %196 = vmatprep.subr.mxu0 0.0
    %197 = vmatpush1.msra.mxu0 %v176
    %198 = vmatprep.subr.mxu0 0.0
    %199 = vmatpush1.msra.mxu0 %v177
    %200 = vmatprep.subr.mxu0 0.0
    %201 = vmatpush1.msra.mxu0 %v178
    %202 = vmatprep.subr.mxu0 0.0
    %203 = vmatpush1.msra.mxu0 %v179
    %204 = vmatprep.subr.mxu0 0.0
    %205 = vmatpush1.msra.mxu0 %v180
    %206 = vmatprep.subr.mxu0 0.0
    %207 = vmatpush1.msra.mxu0 %v181
    %208 = vmatprep.subr.mxu0 0.0
    %209 = vmatpush1.msra.mxu0 %v182
    %210 = vmatprep.subr.mxu0 0.0
    %211 = vmatpush1.msra.mxu0 %v183
    %212 = vmatprep.subr.mxu0 0.0
    %213 = vmatpush1.msra.mxu0 %v184
    %214 = vmatprep.subr.mxu0 0.0
    %215 = vmatpush1.msra.mxu0 %v185
    %216 = vmatprep.subr.mxu0 0.0
    %217 = vmatpush1.msra.mxu0 %v186
    %218 = vmatprep.subr.mxu0 0.0
    %219 = vmatpush1.msra.mxu0 %v187
    %220 = vmatprep.subr.mxu0 0.0
    %221 = vmatpush1.msra.mxu0 0.0
    %222 = vmatprep.subr.mxu0 0.0
    %223 = vmatpush1.msra.mxu0 0.0
    %224 = vmatprep.subr.mxu0 0.0
    %225 = vmatpush1.msra.mxu0 0.0
    %226 = vmatprep.subr.mxu0 0.0
    %227 = vmatpush1.msra.mxu0 0.0
    %228 = vmatprep.subr.mxu0 0.0
    %229 = vmatpush1.msra.mxu0 0.0
    %230 = vmatprep.subr.mxu0 0.0
    %231 = vmatpush1.msra.mxu0 0.0
    %232 = vmatprep.subr.mxu0 0.0
    %233 = vmatpush1.msra.mxu0 0.0
    %234 = vmatprep.subr.mxu0 0.0
    %235 = vmatpush1.msra.mxu0 0.0
    %236 = vmatprep.subr.mxu0 0.0
    %237 = vmatpush1.msra.mxu0 0.0
    %238 = vmatprep.subr.mxu0 0.0
    %239 = vmatpush1.msra.mxu0 0.0
    %240 = vmatprep.subr.mxu0 0.0
    %241 = vmatpush1.msra.mxu0 0.0
    %242 = vmatprep.subr.mxu0 0.0
    %243 = vmatpush1.msra.mxu0 0.0
    %244 = vmatprep.subr.mxu0 0.0
    %245 = vmatpush1.msra.mxu0 0.0
    %246 = vmatprep.subr.mxu0 0.0
    %247 = vmatpush1.msra.mxu0 0.0
    %248 = vmatprep.subr.mxu0 0.0
    %249 = vmatpush1.msra.mxu0 0.0
    %250 = vmatprep.subr.mxu0 0.0
    %251 = vmatpush1.msra.mxu0 0.0
    %252 = vmatprep.mubr.f32.mxu0 0.0
    %253 = vmatmul.mubr.f32.gmra.mrb[0].mxu0 %v159
    %v254 = vpop.f32.mrb[0].mxu0
    %v255 = vadd.f32 0.0, %v254
    %v256 = vpop.f32.mrb[0].mxu0
    %257 = vdwg.mxu0
    %v258 = vlaneseq
    %v259 = vshrl.u32 %v258, 7
    %v260 = vsub.s32 0, %v259
    %v261 = vrot.slane %v73, %v260
    %v262 = vmul.f32 %v162, %v261
    %v263 = vsub.f32 %v255, %v262
    %v264 = vmul.f32 %v171, %v263
    %v265 = vlaneseq
    %v266 = vshrl.u32 %v265, 7
    %v267 = vsub.s32 0, %v266
    %v268 = vrot.slane %v74, %v267
    %v269 = vadd.f32 %v264, %v268
    %v270 = vmax.f32 %v269, 0.0
    %271 = vadd.xlane.f32.xlu0 %v270
    %v272 = vpop.xlane.xlu0 %271
    %v273 = vmul.f32 %v272, 0.0078125
    %v274 = vmul.f32 %v270, %v270
    %275 = vadd.xlane.f32.xlu0 %v274
    %v276 = vpop.xlane.xlu0 %275
    %v277 = vmul.f32 %v276, 0.0078125
    %v278 = vmul.f32 %v273, %v273
    %v279 = vsub.f32 %v277, %v278
    %v280 = vmax.f32 %v279, 0.0
    %v281 = vadd.f32 %v280, 1e-05
    %v282 = vrsqrt.pop %v281
    %v283 = vlaneseq
    %v284 = vshrl.u32 %v283, 7
    %v285 = vsub.s32 0, %v284
    %v286 = vrot.slane %v75, %v285
    %v287 = vmul.f32 %v270, %v286
    %288 = vadd.xlane.f32.xlu0 %v287
    %v289 = vpop.xlane.xlu0 %288
    %v290 = vstv %s76
    %v291 = vmul.f32 %v273, %v290
    %v292 = vsub.f32 %v289, %v291
    %v293 = vmul.f32 %v282, %v292
    %v294 = vstv %s77
    %v295 = vadd.f32 %v293, %v294
    %vm296 = vcmask 7168
    %297 = vst.msk [vmem:[%s5] sm:$0xff] %vm296, %v295
    // Predicated region
    $region38: #{tpu_custom_call.1} parent=1 // pred_check
      _
    $region39: #{tpu_custom_call.1} parent=1 // pred_check_branch
      %299 = sbr.rel (0) target = $region41
    $region40: #{tpu_custom_call.1} parent=1 // pred_region
      _
    $region41: #{tpu_custom_call.1} parent=1 // pred_fallthru
      _
    // Predicated region
    $region42: #{tpu_custom_call.1} parent=1 // pred_check
      _
    $region43: #{tpu_custom_call.1} parent=1 // pred_check_branch
      %301 = sbr.rel (0) target = $region45
    $region44: #{tpu_custom_call.1} parent=1 // pred_region
      _
    $region45: #{tpu_custom_call.1} parent=1 // pred_fallthru
      _
    %302 = vsyncpa [#allocation3], 1
    %303 = vsyncpa [#allocation6], 1
    %304 = vsyncpa [#allocation4], 1

</llo_original>
